<compile_context>
chip_gen: v7x
topology: tpu7x:2x2x1
jax: 0.10.0
libtpu: 0.0.40
codegen_flags: <defaults>
</compile_context>

<pallas_src>
import functools

import jax
import jax.numpy as jnp
from jax.experimental import pallas as pl
from jax.experimental.pallas import tpu as pltpu


def _round_up(x, m):
    return ((x + m - 1) // m) * m


def _vmem_limit_bytes():
    """Generation-aware scoped-VMEM limit (leave headroom below physical capacity)."""
    try:
        cap = int(pltpu.get_tpu_info().vmem_capacity_bytes)
    except Exception:
        cap = 64 * 1024 * 1024  # conservative fallback (v7x per-TensorCore)
    return min(int(cap * 3 // 4), cap - 8 * 1024 * 1024)


def _batch_tile(B, cap=128):
    """Batch tile: no padding needed, and >=2 tiles when B >= 16 (v7x megacore)."""
    if B <= 8:
        return B                       # block == full batch dim -> satisfies layout rule
    TB = min(cap, (B // 8) * 8)
    if B >= 16:
        TB = min(TB, max(8, _round_up((B + 1) // 2, 8)))
    return TB


def _seq_tile(S, H, Lp, TB, feat_itemsize, wt_itemsize, vmem_limit):
    """Largest seq tile (multiple of 8) whose double-buffered footprint fits the budget."""
    # Resident footprint (weights counted double-buffered to be conservative).
    resident = 2 * ((H * H + H) + (H * Lp + Lp)) * wt_itemsize
    resident += 2 * TB * Lp * feat_itemsize          # output blocks
    resident += TB * H * 4                           # f32 accumulator scratch
    budget = vmem_limit - resident - 2 * 1024 * 1024  # safety margin
    # Per sequence row: feature tile row + f32 weight row (lane dim padded to 128), 2x buffered.
    per_row = 2 * TB * (H * feat_itemsize + 128 * 4)
    ts = budget // per_row if budget > 0 else 0
    ts = max(8, (ts // 8) * 8)
    return min(ts, _round_up(S, 8))


def _mean_head_kernel(feat_ref, w_ref, w1_ref, b1_ref, w2_ref, b2_ref, out_ref,
                      acc_ref, *, seq_len):
    s = pl.program_id(1)

    @pl.when(s == 0)
    def _init():
        acc_ref[...] = jnp.zeros_like(acc_ref)

    feats = feat_ref[...].astype(jnp.float32)            # [TB, TS, H]
    w = w_ref[...]                                       # [TB, TS, 1] f32 = mask * 1/len
    ts = feats.shape[1]
    # Zero the (possibly garbage) sequence tail of the last tile explicitly.
    seq_pos = s * ts + jax.lax.broadcasted_iota(jnp.int32, (1, ts, 1), 1)
    valid = seq_pos < seq_len
    acc_ref[...] += jnp.sum(jnp.where(valid, feats * w, 0.0), axis=1)

    @pl.when(s == pl.num_programs(1) - 1)
    def _finalize():
        x = acc_ref[...]                                 # [TB, H] masked mean (f32)
        # dropout -> identity (eval mode)
        h = jnp.tanh(
            jnp.dot(x, w1_ref[...], preferred_element_type=jnp.float32) + b1_ref[...])
        # dropout -> identity (eval mode)
        out = jnp.dot(h, w2_ref[...], preferred_element_type=jnp.float32) + b2_ref[...]
        out_ref[...] = out.astype(out_ref.dtype)


def _cls_head_kernel(x_ref, w1_ref, b1_ref, w2_ref, b2_ref, out_ref):
    x = x_ref[...].astype(jnp.float32)                   # [TB, H] (CLS token features)
    h = jnp.tanh(
        jnp.dot(x, w1_ref[...], preferred_element_type=jnp.float32) + b1_ref[...])
    out = jnp.dot(h, w2_ref[...], preferred_element_type=jnp.float32) + b2_ref[...]
    out_ref[...] = out.astype(out_ref.dtype)


@functools.partial(jax.jit, static_argnames=("pooling_type",))
def classification_head(features, attention_mask, w_dense, b_dense, w_out, b_out,
                        pooling_type="mean"):
    """Pallas implementation of ImprovedClassificationHead.forward (inference).

    features:       [B, S, H]
    attention_mask: [B, S] (0/1)
    w_dense:        [H, H]  (PyTorch Linear layout: [out, in])
    b_dense:        [H]
    w_out:          [L, H]
    b_out:          [L]
    returns:        [B, L]
    """
    B, S, H = features.shape
    L = w_out.shape[0]
    Lp = _round_up(L, 128)          # lane-dense output stores / full MXU N dim

    # Pre-transpose Linear weights once (trace-time) -> kernel sees [in, out], never
    # issues an in-kernel transpose.  Pad the label dim with zeros (sliced off below).
    w1t = w_dense.T                                              # [H, H]
    b1 = b_dense.reshape(1, H)                                   # [1, H]
    w2t = jnp.pad(w_out.T, ((0, 0), (0, Lp - L)))                # [H, Lp]
    b2 = jnp.pad(b_out.reshape(1, L), ((0, 0), (0, Lp - L)))     # [1, Lp]

    vmem_limit = _vmem_limit_bytes()
    TB = _batch_tile(B)
    const = lambda *_: (0, 0)

    if pooling_type == "cls":
        # Only seq position 0 is needed; a wrapper slice (B*H read + B*H write + B*H kernel
        # read) beats pulling an (>=8)-row seq tile per batch block through the pipeline.
        x0 = features[:, 0, :]                                   # [B, H]
        out = pl.pallas_call(
            _cls_head_kernel,
            out_shape=jax.ShapeDtypeStruct((B, Lp), features.dtype),
            grid=(pl.cdiv(B, TB),),
            in_specs=[
                pl.BlockSpec((TB, H), lambda b: (b, 0)),
                pl.BlockSpec((H, H), const),                     # resident weights
                pl.BlockSpec((1, H), const),
                pl.BlockSpec((H, Lp), const),
                pl.BlockSpec((1, Lp), const),
            ],
            out_specs=pl.BlockSpec((TB, Lp), lambda b: (b, 0)),
            compiler_params=pltpu.CompilerParams(
                dimension_semantics=("parallel",),
                vmem_limit_bytes=vmem_limit),
        )(x0, w1t, b1, w2t, b2)
        return out[:, :L]

    elif pooling_type == "mean":
        feat_itemsize = jnp.dtype(features.dtype).itemsize
        wt_itemsize = jnp.dtype(w_dense.dtype).itemsize
        TS = _seq_tile(S, H, Lp, TB, feat_itemsize, wt_itemsize, vmem_limit)

        # mask * 1/clamp(sum_mask, 1e-9), computed ONCE here, passed as [B, S, 1] f32 so
        # the kernel's broadcast over H is a cheap lane splat (no relayout, no divide).
        mask = attention_mask.astype(jnp.float32)
        inv_len = 1.0 / jnp.maximum(jnp.sum(mask, axis=1, keepdims=True), 1e-9)
        w = (mask * inv_len)[:, :, None]                         # [B, S, 1]

        out = pl.pallas_call(
            functools.partial(_mean_head_kernel, seq_len=S),
            out_shape=jax.ShapeDtypeStruct((B, Lp), features.dtype),
            grid=(pl.cdiv(B, TB), pl.cdiv(S, TS)),
            in_specs=[
                pl.BlockSpec((TB, TS, H), lambda b, s: (b, s, 0)),   # streamed feature tiles
                pl.BlockSpec((TB, TS, 1), lambda b, s: (b, s, 0)),   # streamed mask weights
                pl.BlockSpec((H, H), const),                         # resident weights
                pl.BlockSpec((1, H), const),
                pl.BlockSpec((H, Lp), const),
                pl.BlockSpec((1, Lp), const),
            ],
            out_specs=pl.BlockSpec((TB, Lp), lambda b, s: (b, 0)),   # resident across seq axis
            scratch_shapes=[pltpu.VMEM((TB, H), jnp.float32)],       # f32 accumulator
            compiler_params=pltpu.CompilerParams(
                dimension_semantics=("parallel", "arbitrary"),
                vmem_limit_bytes=vmem_limit),
        )(features, w, w1t, b1, w2t, b2)
        return out[:, :L]

    else:
        raise ValueError("Unsupported pooling type. Use 'cls' or 'mean'.")


def _reference(features, attention_mask, w_dense, b_dense, w_out, b_out, pooling_type):
    if pooling_type == "cls":
        x = features[:, 0, :]
    else:
        m = attention_mask[:, :, None].astype(jnp.float32)
        x = jnp.sum(features * m, axis=1) / jnp.maximum(jnp.sum(m, axis=1), 1e-9)
    h = jnp.tanh(x @ w_dense.T + b_dense)
    return h @ w_out.T + b_out


if __name__ == "__main__":
    # Small config implied by the module: hidden_size=32, num_labels=4, seq=8, batch=2.
    B, S, H, L = 2, 8, 32, 4
    key = jax.random.PRNGKey(0)
    k_feat, k_mask, k_w1, k_b1, k_w2, k_b2 = jax.random.split(key, 6)

    features = jax.random.normal(k_feat, (B, S, H), dtype=jnp.float32)
    # Deterministic 0/1 attention mask with at least one valid token per row.
    mask = (jax.random.uniform(k_mask, (B, S)) > 0.3).astype(jnp.float32)
    mask = mask.at[:, 0].set(1.0)

    # PyTorch-Linear-style uniform init (±1/sqrt(fan_in)).
    bound1 = 1.0 / jnp.sqrt(jnp.float32(H))
    w_dense = jax.random.uniform(k_w1, (H, H), minval=-bound1, maxval=bound1, dtype=jnp.float32)
    b_dense = jax.random.uniform(k_b1, (H,), minval=-bound1, maxval=bound1, dtype=jnp.float32)
    w_out = jax.random.uniform(k_w2, (L, H), minval=-bound1, maxval=bound1, dtype=jnp.float32)
    b_out = jax.random.uniform(k_b2, (L,), minval=-bound1, maxval=bound1, dtype=jnp.float32)

    # 'mean' pooling path (masked-sum accumulator over the seq grid axis, no feature padding).
    out = jax.block_until_ready(
        classification_head(features, mask, w_dense, b_dense, w_out, b_out,
                            pooling_type="mean"))
    ref = _reference(features, mask, w_dense, b_dense, w_out, b_out, "mean")
    assert out.shape == (B, L)
    assert jnp.allclose(out, ref, atol=1e-5, rtol=1e-5)

    # 'cls' pooling path (only seq position 0 is read).
    out_cls = jax.block_until_ready(
        classification_head(features, mask, w_dense, b_dense, w_out, b_out,
                            pooling_type="cls"))
    ref_cls = _reference(features, mask, w_dense, b_dense, w_out, b_out, "cls")
    assert jnp.allclose(out_cls, ref_cls, atol=1e-5, rtol=1e-5)

    print("KERNEL_OK")
</pallas_src>

<mosaic_0001>
module attributes {stable_mosaic.version = 11 : i64} {
  func.func @_mean_head_kernel(%arg0: i32, %arg1: i32, %arg2: memref<2x8x32xf32, #tpu.memory_space<vmem>>, %arg3: memref<2x8x1xf32, #tpu.memory_space<vmem>>, %arg4: memref<32x32xf32, #tpu.memory_space<vmem>>, %arg5: memref<1x32xf32, #tpu.memory_space<vmem>>, %arg6: memref<32x128xf32, #tpu.memory_space<vmem>>, %arg7: memref<1x128xf32, #tpu.memory_space<vmem>>, %arg8: memref<2x128xf32, #tpu.memory_space<vmem>>, %arg9: memref<2x32xf32, #tpu.memory_space<vmem>>) attributes {dimension_semantics = [#tpu.dimension_semantics<parallel>, #tpu.dimension_semantics<arbitrary>], iteration_bounds = array<i64: 1, 1>, scalar_prefetch = 0 : i64, scratch_operands = 1 : i64, tpu.core_type = #tpu.core_type<tc>, window_params = [{transform_indices = @transform_0, window_bounds = array<i64: 2, 8, 32>}, {transform_indices = @transform_1, window_bounds = array<i64: 2, 8, 1>}, {pipeline_mode = #tpu.pipeline_mode<synchronous>, transform_indices = @transform_2, window_bounds = array<i64: 32, 32>}, {pipeline_mode = #tpu.pipeline_mode<synchronous>, transform_indices = @transform_3, window_bounds = array<i64: 1, 32>}, {pipeline_mode = #tpu.pipeline_mode<synchronous>, transform_indices = @transform_4, window_bounds = array<i64: 32, 128>}, {pipeline_mode = #tpu.pipeline_mode<synchronous>, transform_indices = @transform_5, window_bounds = array<i64: 1, 128>}, {transform_indices = @transform_6, window_bounds = array<i64: 2, 128>}]} {
    %c0_i32 = arith.constant 0 : i32
    %0 = arith.cmpi eq, %arg1, %c0_i32 : i32
    %1 = arith.extui %0 : i1 to i32
    %c0_i32_0 = arith.constant 0 : i32
    %2 = arith.cmpi ne, %1, %c0_i32_0 : i32
    scf.if %2 {
      %cst_14 = arith.constant 0.000000e+00 : f32
      %24 = vector.broadcast %cst_14 : f32 to vector<2x32xf32>
      %c0_15 = arith.constant 0 : index
      %c0_16 = arith.constant 0 : index
      %25 = vector.load %arg9[%c0_15, %c0_16] : memref<2x32xf32, #tpu.memory_space<vmem>>, vector<2x32xf32>
      tpu.vector_store %arg9[%c0_15, %c0_16], %24 {strides = array<i32>} : memref<2x32xf32, #tpu.memory_space<vmem>>, vector<2x32xf32>,
    } else {
    }
    %c0 = arith.constant 0 : index
    %c0_1 = arith.constant 0 : index
    %c0_2 = arith.constant 0 : index
    %3 = vector.load %arg2[%c0, %c0_1, %c0_2] : memref<2x8x32xf32, #tpu.memory_space<vmem>>, vector<2x8x32xf32>
    %c0_3 = arith.constant 0 : index
    %c0_4 = arith.constant 0 : index
    %c0_5 = arith.constant 0 : index
    %4 = vector.load %arg3[%c0_3, %c0_4, %c0_5] : memref<2x8x1xf32, #tpu.memory_space<vmem>>, vector<2x8x1xf32>
    %c8_i32 = arith.constant 8 : i32
    %5 = arith.muli %arg1, %c8_i32 : i32
    %6 = tpu.iota {dimensions = array<i32: 1>} : vector<1x8x1xi32>
    %7 = vector.broadcast %5 : i32 to vector<1x8x1xi32>
    %8 = arith.addi %7, %6 : vector<1x8x1xi32>
    %c8_i32_6 = arith.constant 8 : i32
    %9 = vector.broadcast %c8_i32_6 : i32 to vector<1x8x1xi32>
    %10 = arith.cmpi slt, %8, %9 : vector<1x8x1xi32>
    %c0_7 = arith.constant 0 : index
    %c0_8 = arith.constant 0 : index
    %11 = vector.load %arg9[%c0_7, %c0_8] : memref<2x32xf32, #tpu.memory_space<vmem>>, vector<2x32xf32>
    %12 = vector.broadcast %4 : vector<2x8x1xf32> to vector<2x8x32xf32>
    %13 = arith.mulf %3, %12 : vector<2x8x32xf32>
    %cst = arith.constant 0.000000e+00 : f32
    %14 = vector.shape_cast %10 : vector<1x8x1xi1> to vector<1x8x1xi1>
    %15 = vector.broadcast %14 : vector<1x8x1xi1> to vector<2x8x32xi1>
    %16 = vector.broadcast %cst : f32 to vector<2x8x32xf32>
    %17 = arith.select %15, %13, %16 : vector<2x8x32xi1>, vector<2x8x32xf32>
    %cst_9 = arith.constant dense<0.000000e+00> : vector<2x32xf32>
    %18 = vector.multi_reduction <add>, %17, %cst_9 [1] : vector<2x8x32xf32> to vector<2x32xf32>
    %19 = arith.addf %11, %18 : vector<2x32xf32>
    %c0_10 = arith.constant 0 : index
    %c0_11 = arith.constant 0 : index
    %20 = vector.load %arg9[%c0_10, %c0_11] : memref<2x32xf32, #tpu.memory_space<vmem>>, vector<2x32xf32>
    tpu.vector_store %arg9[%c0_10, %c0_11], %19 {strides = array<i32>} : memref<2x32xf32, #tpu.memory_space<vmem>>, vector<2x32xf32>,
    %c0_i32_12 = arith.constant 0 : i32
    %21 = arith.cmpi eq, %arg1, %c0_i32_12 : i32
    %22 = arith.extui %21 : i1 to i32
    %c0_i32_13 = arith.constant 0 : i32
    %23 = arith.cmpi ne, %22, %c0_i32_13 : i32
    scf.if %23 {
      %c0_14 = arith.constant 0 : index
      %c0_15 = arith.constant 0 : index
      %24 = vector.load %arg9[%c0_14, %c0_15] : memref<2x32xf32, #tpu.memory_space<vmem>>, vector<2x32xf32>
      %c0_16 = arith.constant 0 : index
      %c0_17 = arith.constant 0 : index
      %25 = vector.load %arg4[%c0_16, %c0_17] : memref<32x32xf32, #tpu.memory_space<vmem>>, vector<32x32xf32>
      %cst_18 = arith.constant dense<0.000000e+00> : vector<2x32xf32>
      %26 = tpu.matmul %24, %25, %cst_18 {dimension_numbers = #tpu.dot_dimension_numbers<[1], [0], [0], [1], [0, 0, 1, 1], [], []>} : vector<2x32xf32>, vector<32x32xf32>, vector<2x32xf32> -> vector<2x32xf32>
      %c0_19 = arith.constant 0 : index
      %c0_20 = arith.constant 0 : index
      %27 = vector.load %arg5[%c0_19, %c0_20] : memref<1x32xf32, #tpu.memory_space<vmem>>, vector<1x32xf32>
      %28 = vector.broadcast %27 : vector<1x32xf32> to vector<2x32xf32>
      %29 = arith.addf %26, %28 : vector<2x32xf32>
      %30 = math.tanh %29 : vector<2x32xf32>
      %c0_21 = arith.constant 0 : index
      %c0_22 = arith.constant 0 : index
      %31 = vector.load %arg6[%c0_21, %c0_22] : memref<32x128xf32, #tpu.memory_space<vmem>>, vector<32x128xf32>
      %cst_23 = arith.constant dense<0.000000e+00> : vector<2x128xf32>
      %32 = tpu.matmul %30, %31, %cst_23 {dimension_numbers = #tpu.dot_dimension_numbers<[1], [0], [0], [1], [0, 0, 1, 1], [], []>} : vector<2x32xf32>, vector<32x128xf32>, vector<2x128xf32> -> vector<2x128xf32>
      %c0_24 = arith.constant 0 : index
      %c0_25 = arith.constant 0 : index
      %33 = vector.load %arg7[%c0_24, %c0_25] : memref<1x128xf32, #tpu.memory_space<vmem>>, vector<1x128xf32>
      %34 = vector.broadcast %33 : vector<1x128xf32> to vector<2x128xf32>
      %35 = arith.addf %32, %34 : vector<2x128xf32>
      %c0_26 = arith.constant 0 : index
      %c0_27 = arith.constant 0 : index
      %36 = vector.load %arg8[%c0_26, %c0_27] : memref<2x128xf32, #tpu.memory_space<vmem>>, vector<2x128xf32>
      tpu.vector_store %arg8[%c0_26, %c0_27], %35 {strides = array<i32>} : memref<2x128xf32, #tpu.memory_space<vmem>>, vector<2x128xf32>,
    } else {
    }
    return
  }
  func.func @transform_0(%arg0: i32, %arg1: i32) -> (i32, i32, i32) {
    %c0_i32 = arith.constant 0 : i32
    %c0_i32_0 = arith.constant 0 : i32
    return %arg0, %arg1, %c0_i32 : i32, i32, i32
  }
  func.func @transform_1(%arg0: i32, %arg1: i32) -> (i32, i32, i32) {
    %c0_i32 = arith.constant 0 : i32
    %c0_i32_0 = arith.constant 0 : i32
    return %arg0, %arg1, %c0_i32 : i32, i32, i32
  }
  func.func @transform_2(%arg0: i32, %arg1: i32) -> (i32, i32) {
    %c0_i32 = arith.constant 0 : i32
    %c0_i32_0 = arith.constant 0 : i32
    %c0_i32_1 = arith.constant 0 : i32
    return %c0_i32, %c0_i32_0 : i32, i32
  }
  func.func @transform_3(%arg0: i32, %arg1: i32) -> (i32, i32) {
    %c0_i32 = arith.constant 0 : i32
    %c0_i32_0 = arith.constant 0 : i32
    %c0_i32_1 = arith.constant 0 : i32
    return %c0_i32, %c0_i32_0 : i32, i32
  }
  func.func @transform_4(%arg0: i32, %arg1: i32) -> (i32, i32) {
    %c0_i32 = arith.constant 0 : i32
    %c0_i32_0 = arith.constant 0 : i32
    %c0_i32_1 = arith.constant 0 : i32
    return %c0_i32, %c0_i32_0 : i32, i32
  }
  func.func @transform_5(%arg0: i32, %arg1: i32) -> (i32, i32) {
    %c0_i32 = arith.constant 0 : i32
    %c0_i32_0 = arith.constant 0 : i32
    %c0_i32_1 = arith.constant 0 : i32
    return %c0_i32, %c0_i32_0 : i32, i32
  }
  func.func @transform_6(%arg0: i32, %arg1: i32) -> (i32, i32) {
    %c0_i32 = arith.constant 0 : i32
    %c0_i32_0 = arith.constant 0 : i32
    return %arg0, %c0_i32 : i32, i32
  }
}

</mosaic_0001>

<llo_original>
// kernel: classification_head.1
$region0: #{classification_head.1}
  #allocation0 [shape = 'u32[]', space=smem, size = 0x4, offset = 0x4, fixed_abs, tag = 'smem constant byte address 0x4 - core index']
  #allocation1 [shape = 'u32[144,128]{1,0:T(1,128)}', space=vmem, size = 0x12000, scoped, tag = 'internal scratch']
  #allocation2 [shape = 'f32[2,32]{1,0:T(2,128)}', space=vmem, size = 0x400, scoped, tag = 'scratch operand']
  %s0 = inlined_call_operand.vmem [shape: f32[2,8,32], index: 0, kind: input, shape index: {}]
  %s1 = inlined_call_operand.vmem [shape: f32[2,8,1], index: 1, kind: input, shape index: {}]
  %s2 = inlined_call_operand.vmem [shape: f32[32,32], index: 2, kind: input, shape index: {}]
  %s3 = inlined_call_operand.vmem [shape: f32[1,32], index: 3, kind: input, shape index: {}]
  %s4 = inlined_call_operand.vmem [shape: f32[32,128], index: 4, kind: input, shape index: {}]
  %s5 = inlined_call_operand.vmem [shape: f32[1,128], index: 5, kind: input, shape index: {}]
  %s6 = inlined_call_operand.hbm [shape: f32[2,128], index: 6, kind: output, shape index: {}]
  %s7 = sld [smem:[#allocation0]]
  $region42: #{classification_head.1} parent=0
    _
  %s9 = ssub.s32 1, %s7
  %s10 = scalar_select 0, %s9, %s7
  $region1: #{classification_head.1} parent=0
    #allocation3 [shape = 'u8[1024]{0}', space=vmem, size = 0x400, scoped, tag = 'output window, operand 0, single buffered']
    #allocation4 [shape = 's32[1]{0}', space=sflag, size = 0x4, scoped, tag = 'scoped memory for classification_head.1']
    %11 = vsyncpa [#allocation4], 0
    // Predicated region
    $region2: #{classification_head.1} parent=1 // pred_check
      _
    $region3: #{classification_head.1} parent=1 // pred_check_branch
      %13 = sbr.rel (0) target = $region5
    $region4: #{classification_head.1} parent=1 // pred_region
      _
    $region5: #{classification_head.1} parent=1 // pred_fallthru
      _
    // Predicated region
    $region6: #{classification_head.1} parent=1 // pred_check
      _
    $region7: #{classification_head.1} parent=1 // pred_check_branch
      %15 = sbr.rel (0) target = $region9
    $region8: #{classification_head.1} parent=1 // pred_region
      _
    $region9: #{classification_head.1} parent=1 // pred_fallthru
      _
    // Predicated region
    $region10: #{classification_head.1} parent=1 // pred_check
      _
    $region11: #{classification_head.1} parent=1 // pred_check_branch
      %17 = sbr.rel (0) target = $region13
    $region12: #{classification_head.1} parent=1 // pred_region
      _
    $region13: #{classification_head.1} parent=1 // pred_fallthru
      _
    // Predicated region
    $region14: #{classification_head.1} parent=1 // pred_check
      _
    $region15: #{classification_head.1} parent=1 // pred_check_branch
      %19 = sbr.rel (0) target = $region17
    $region16: #{classification_head.1} parent=1 // pred_region
      _
    $region17: #{classification_head.1} parent=1 // pred_fallthru
      _
    // Predicated region
    $region18: #{classification_head.1} parent=1 // pred_check
      _
    $region19: #{classification_head.1} parent=1 // pred_check_branch
      %21 = sbr.rel (0) target = $region21
    $region20: #{classification_head.1} parent=1 // pred_region
      _
    $region21: #{classification_head.1} parent=1 // pred_fallthru
      _
    // Predicated region
    $region22: #{classification_head.1} parent=1 // pred_check
      _
    $region23: #{classification_head.1} parent=1 // pred_check_branch
      %23 = sbr.rel (0) target = $region25
    $region24: #{classification_head.1} parent=1 // pred_region
      _
    $region25: #{classification_head.1} parent=1 // pred_fallthru
      _
    %p24 = scmp.eq.s32.totalorder 0, 0
    // Predicated region
    $region26: #{classification_head.1} parent=1 // pred_check
      %p25 = pneg %p24
    $region27: #{classification_head.1} parent=1 // pred_check_branch
      %27 = sbr.rel (%p25) target = $region29
    $region28: #{classification_head.1} parent=1 // pred_region
      %vm28 = vcmask 254976
      %29 = vst.msk [vmem:[#allocation2] sm:$0x3] %vm28, 0.0
    $region29: #{classification_head.1} parent=1 // pred_fallthru
      _
    %v30 = vld [vmem:[%s0] sm:$0xff]
    %v31 = vld [vmem:[%s0 + $0x8] sm:$0xff]
    %v32 = vld [vmem:[%s1] sm:$0xff]
    %v33 = vld [vmem:[%s1 + $0x8] sm:$0xff]
    %s34 = smul.u32 0, 8
    %v35 = vlaneseq
    %v36 = vshrl.u32 %v35, 7
    %v37 = vstv %s34
    %v38 = vadd.s32 %v37, %v36
    %vm39 = vcmp.lt.s32.totalorder %v38, 8
    %v40 = vld [vmem:[#allocation2] sm:$0x3]
    %42 = vset.pattern.permute.xlu0 0
    %43 = vperm.xlu0 %42, %v32
    %v44 = vpop.permute.xlu0 %43
    %47 = vset.pattern.permute.xlu0 0
    %48 = vperm.xlu0 %47, %v33
    %v49 = vpop.permute.xlu0 %48
    %v51 = vmul.f32 %v30, %v44
    %v52 = vmul.f32 %v31, %v49
    %v53 = vsel %vm39, 1, 0
    %vm54 = vcmp.eq.s32.totalorder %v53, 1
    %v55 = vsel %vm54, %v51, 0.0
    %v56 = vsel %vm54, %v52, 0.0
    %vm57 = vcmask 261120
    %v58 = vsel %vm57, %v55, 0.0
    %v59 = vrot.slane %v58, 4
    %v60 = vadd.f32 %v58, %v59
    %v61 = vrot.slane %v60, 2
    %v62 = vadd.f32 %v60, %v61
    %v63 = vrot.slane %v62, 1
    %v64 = vadd.f32 %v62, %v63
    %v65 = vsel %vm57, %v56, 0.0
    %v66 = vrot.slane %v65, 4
    %v67 = vadd.f32 %v65, %v66
    %v68 = vrot.slane %v67, 2
    %v69 = vadd.f32 %v67, %v68
    %v70 = vrot.slane %v69, 1
    %v71 = vadd.f32 %v69, %v70
    %vm74 = vcmask 1041409
    %v75 = vsel %vm74, %v71, %v64
    %v77 = vadd.f32 %v40, %v75
    %vm78 = vcmask 254976
    %79 = vst.msk [vmem:[#allocation2] sm:$0x3] %vm78, %v77
    // Predicated region
    $region30: #{classification_head.1} parent=1 // pred_check
      %p80 = pneg %p24
    $region31: #{classification_head.1} parent=1 // pred_check_branch
      %82 = sbr.rel (%p80) target = $region33
    $region32: #{classification_head.1} parent=1 // pred_region
      %v83 = vld [vmem:[#allocation2] sm:$0x3]
      %v84 = vld [vmem:[%s2] sm:$0xff]
      %v85 = vld [vmem:[%s2 + $0x8] sm:$0xff]
      %v86 = vld [vmem:[%s2 + $0x10] sm:$0xff]
      %v87 = vld [vmem:[%s2 + $0x18] sm:$0xff]
      %v88 = vld [vmem:[%s3] sm:$0x1]
      %v90 = vlaneseq
      %v91 = vshrl.u32 %v90, 7
      %v92 = vsub.s32 0, %v91
      %v93 = vrot.slane %v88, %v92
      %v96 = vsel %vm57, %v83, 0
      %98 = vmatprep.subr.mxu0 0.0
      %99 = vmatpush1.msra.mxu0 %v84
      %100 = vmatprep.subr.mxu0 0.0
      %101 = vmatpush1.msra.mxu0 %v85
      %102 = vmatprep.subr.mxu0 0.0
      %103 = vmatpush1.msra.mxu0 %v86
      %104 = vmatprep.subr.mxu0 0.0
      %105 = vmatpush1.msra.mxu0 %v87
      %106 = vmatprep.subr.mxu0 0.0
      %107 = vmatpush1.msra.mxu0 0.0
      %108 = vmatprep.subr.mxu0 0.0
      %109 = vmatpush1.msra.mxu0 0.0
      %110 = vmatprep.subr.mxu0 0.0
      %111 = vmatpush1.msra.mxu0 0.0
      %112 = vmatprep.subr.mxu0 0.0
      %113 = vmatpush1.msra.mxu0 0.0
      %114 = vmatprep.subr.mxu0 0.0
      %115 = vmatpush1.msra.mxu0 0.0
      %116 = vmatprep.subr.mxu0 0.0
      %117 = vmatpush1.msra.mxu0 0.0
      %118 = vmatprep.subr.mxu0 0.0
      %119 = vmatpush1.msra.mxu0 0.0
      %120 = vmatprep.subr.mxu0 0.0
      %121 = vmatpush1.msra.mxu0 0.0
      %122 = vmatprep.subr.mxu0 0.0
      %123 = vmatpush1.msra.mxu0 0.0
      %124 = vmatprep.subr.mxu0 0.0
      %125 = vmatpush1.msra.mxu0 0.0
      %126 = vmatprep.subr.mxu0 0.0
      %127 = vmatpush1.msra.mxu0 0.0
      %128 = vmatprep.subr.mxu0 0.0
      %129 = vmatpush1.msra.mxu0 0.0
      %130 = vmatprep.subr.mxu0 0.0
      %131 = vmatpush1.msra.mxu0 0.0
      %132 = vmatprep.subr.mxu0 0.0
      %133 = vmatpush1.msra.mxu0 0.0
      %134 = vmatprep.subr.mxu0 0.0
      %135 = vmatpush1.msra.mxu0 0.0
      %136 = vmatprep.subr.mxu0 0.0
      %137 = vmatpush1.msra.mxu0 0.0
      %138 = vmatprep.subr.mxu0 0.0
      %139 = vmatpush1.msra.mxu0 0.0
      %140 = vmatprep.subr.mxu0 0.0
      %141 = vmatpush1.msra.mxu0 0.0
      %142 = vmatprep.subr.mxu0 0.0
      %143 = vmatpush1.msra.mxu0 0.0
      %144 = vmatprep.subr.mxu0 0.0
      %145 = vmatpush1.msra.mxu0 0.0
      %146 = vmatprep.subr.mxu0 0.0
      %147 = vmatpush1.msra.mxu0 0.0
      %148 = vmatprep.subr.mxu0 0.0
      %149 = vmatpush1.msra.mxu0 0.0
      %150 = vmatprep.subr.mxu0 0.0
      %151 = vmatpush1.msra.mxu0 0.0
      %152 = vmatprep.subr.mxu0 0.0
      %153 = vmatpush1.msra.mxu0 0.0
      %154 = vmatprep.subr.mxu0 0.0
      %155 = vmatpush1.msra.mxu0 0.0
      %156 = vmatprep.subr.mxu0 0.0
      %157 = vmatpush1.msra.mxu0 0.0
      %158 = vmatprep.subr.mxu0 0.0
      %159 = vmatpush1.msra.mxu0 0.0
      %160 = vmatprep.subr.mxu0 0.0
      %161 = vmatpush1.msra.mxu0 0.0
      %162 = vmatprep.mubr.f32.mxu0 0.0
      %163 = vmatmul.mubr.f32.gmra.mrb[0].mxu0 %v96
      %v164 = vpop.f32.mrb[0].mxu0
      %v165 = vadd.f32 %v93, %v164
      %v166 = vpop.f32.mrb[0].mxu0
      %167 = vdwg.mxu0
      %v168 = vtanh.pop %v165
      %v169 = vld [vmem:[%s4] sm:$0xff]
      %v170 = vld [vmem:[%s4 + $0x8] sm:$0xff]
      %v171 = vld [vmem:[%s4 + $0x10] sm:$0xff]
      %v172 = vld [vmem:[%s4 + $0x18] sm:$0xff]
      %v173 = vld [vmem:[%s5] sm:$0x1]
      %v175 = vlaneseq
      %v176 = vshrl.u32 %v175, 7
      %v177 = vsub.s32 0, %v176
      %v178 = vrot.slane %v173, %v177
      %v181 = vsel %vm57, %v168, 0
      %183 = vmatprep.subr.mxu0 0.0
      %184 = vmatpush1.msra.mxu0 %v169
      %185 = vmatprep.subr.mxu0 0.0
      %186 = vmatpush1.msra.mxu0 %v170
      %187 = vmatprep.subr.mxu0 0.0
      %188 = vmatpush1.msra.mxu0 %v171
      %189 = vmatprep.subr.mxu0 0.0
      %190 = vmatpush1.msra.mxu0 %v172
      %191 = vmatprep.subr.mxu0 0.0
      %192 = vmatpush1.msra.mxu0 0.0
      %193 = vmatprep.subr.mxu0 0.0
      %194 = vmatpush1.msra.mxu0 0.0
      %195 = vmatprep.subr.mxu0 0.0
      %196 = vmatpush1.msra.mxu0 0.0
      %197 = vmatprep.subr.mxu0 0.0
      %198 = vmatpush1.msra.mxu0 0.0
      %199 = vmatprep.subr.mxu0 0.0
      %200 = vmatpush1.msra.mxu0 0.0
      %201 = vmatprep.subr.mxu0 0.0
      %202 = vmatpush1.msra.mxu0 0.0
      %203 = vmatprep.subr.mxu0 0.0
      %204 = vmatpush1.msra.mxu0 0.0
      %205 = vmatprep.subr.mxu0 0.0
      %206 = vmatpush1.msra.mxu0 0.0
      %207 = vmatprep.subr.mxu0 0.0
      %208 = vmatpush1.msra.mxu0 0.0
      %209 = vmatprep.subr.mxu0 0.0
      %210 = vmatpush1.msra.mxu0 0.0
      %211 = vmatprep.subr.mxu0 0.0
      %212 = vmatpush1.msra.mxu0 0.0
      %213 = vmatprep.subr.mxu0 0.0
      %214 = vmatpush1.msra.mxu0 0.0
      %215 = vmatprep.subr.mxu0 0.0
      %216 = vmatpush1.msra.mxu0 0.0
      %217 = vmatprep.subr.mxu0 0.0
      %218 = vmatpush1.msra.mxu0 0.0
      %219 = vmatprep.subr.mxu0 0.0
      %220 = vmatpush1.msra.mxu0 0.0
      %221 = vmatprep.subr.mxu0 0.0
      %222 = vmatpush1.msra.mxu0 0.0
      %223 = vmatprep.subr.mxu0 0.0
      %224 = vmatpush1.msra.mxu0 0.0
      %225 = vmatprep.subr.mxu0 0.0
      %226 = vmatpush1.msra.mxu0 0.0
      %227 = vmatprep.subr.mxu0 0.0
      %228 = vmatpush1.msra.mxu0 0.0
      %229 = vmatprep.subr.mxu0 0.0
      %230 = vmatpush1.msra.mxu0 0.0
      %231 = vmatprep.subr.mxu0 0.0
      %232 = vmatpush1.msra.mxu0 0.0
      %233 = vmatprep.subr.mxu0 0.0
      %234 = vmatpush1.msra.mxu0 0.0
      %235 = vmatprep.subr.mxu0 0.0
      %236 = vmatpush1.msra.mxu0 0.0
      %237 = vmatprep.subr.mxu0 0.0
      %238 = vmatpush1.msra.mxu0 0.0
      %239 = vmatprep.subr.mxu0 0.0
      %240 = vmatpush1.msra.mxu0 0.0
      %241 = vmatprep.subr.mxu0 0.0
      %242 = vmatpush1.msra.mxu0 0.0
      %243 = vmatprep.subr.mxu0 0.0
      %244 = vmatpush1.msra.mxu0 0.0
      %245 = vmatprep.subr.mxu0 0.0
      %246 = vmatpush1.msra.mxu0 0.0
      %247 = vmatprep.mubr.f32.mxu0 0.0
      %248 = vmatmul.mubr.f32.gmra.mrb[0].mxu0 %v181
      %v249 = vpop.f32.mrb[0].mxu0
      %v250 = vadd.f32 %v178, %v249
      %v251 = vpop.f32.mrb[0].mxu0
      %252 = vdwg.mxu0
      %253 = vst [vmem:[#allocation3] sm:$0x3] %v250
    $region33: #{classification_head.1} parent=1 // pred_fallthru
      _
    // Predicated region
    $region34: #{classification_head.1} parent=1 // pred_check
      _
    $region35: #{classification_head.1} parent=1 // pred_check_branch
      %255 = sbr.rel (0) target = $region37
    $region36: #{classification_head.1} parent=1 // pred_region
      %s257 = ssub.s32 32, 32
      %258 = vsyncadd [#allocation4], %s257
      %s260 = sshll.u32 [#allocation3], 4
      %s261 = int_to_ptr.vmem [resolvable:$true] %s260
      %263 = dma.vmem_to_hbm [thread:$0]  %s261, 32, %s6, [#allocation4]
    $region37: #{classification_head.1} parent=1 // pred_fallthru
      _
    // Predicated region
    $region38: #{classification_head.1} parent=1 // pred_check
      _
    $region39: #{classification_head.1} parent=1 // pred_check_branch
      %265 = sbr.rel (0) target = $region41
    $region40: #{classification_head.1} parent=1 // pred_region
      %266 = dma.done [#allocation4], 32
    $region41: #{classification_head.1} parent=1 // pred_fallthru
      _
    %267 = vsyncpa [#allocation4], 1

</llo_original>
